<compile_context>
chip_gen: v6e
topology: v6e:2x2x1
jax: 0.10.0
libtpu: 0.0.40
codegen_flags: <defaults>
</compile_context>

<pallas_src>
import jax
import jax.numpy as jnp
from jax.experimental import pallas as pl
from jax.experimental.pallas import tpu as pltpu


def _round_up(x, m):
    return (x + m - 1) // m * m


def mlp_kernel(x_ref, w1_ref, b1_ref, w2_ref, b2_ref, o_ref):
    """Fused feature-major MLP step.

    x_ref : (IN,   tb)  bf16   activations, batch on lanes
    w1_ref: (Hp,   IN)  bf16   hidden weights (transposed, zero-padded 500->512)
    b1_ref: (Hp,   1)   f32
    w2_ref: (OUTp, Hp)  bf16   output weights (transposed, zero-padded 2->8)
    b2_ref: (OUTp, 1)   f32
    o_ref : (OUTp, tb)  f32
    """
    # h^T = W1^T @ x^T : (Hp, tb), f32 MXU accumulation.
    h = jnp.dot(w1_ref[...], x_ref[...], preferred_element_type=jnp.float32)
    # Fused bias + ReLU + bf16 cast: only the bf16 copy feeds the next matmul.
    h = jnp.maximum(h + b1_ref[...], 0.0).astype(jnp.bfloat16)
    # o^T = W2^T @ h^T : (OUTp, tb), f32 accumulation; bias added in f32.
    o = jnp.dot(w2_ref[...], h, preferred_element_type=jnp.float32)
    o_ref[...] = (o + b2_ref[...]).astype(o_ref.dtype)


def prepare_params(w1, b1, w2, b2):
    """One-time weight prep (hoisted out of the per-call path).

    Takes (in_features, out_features)-layout weights (transpose of torch
    nn.Linear's (out, in)) and returns feature-major, zero-padded, bf16 tensors
    plus the true output dim.  Padding is exact: padded hidden rows stay zero
    through relu and contribute nothing to the second matmul.
    """
    IN, H = w1.shape
    OUT = w2.shape[1]
    Hp = _round_up(H, 128)     # hidden dim (sublane axis of h^T), 500 -> 512
    OUTp = _round_up(OUT, 8)   # output rows, 2 -> 8 (sublane aligned)
    w1t = jnp.zeros((Hp, IN), jnp.bfloat16).at[:H, :].set(w1.T.astype(jnp.bfloat16))
    b1t = jnp.zeros((Hp, 1), jnp.float32).at[:H, 0].set(b1.astype(jnp.float32))
    w2t = jnp.zeros((OUTp, Hp), jnp.bfloat16).at[:OUT, :H].set(w2.T.astype(jnp.bfloat16))
    b2t = jnp.zeros((OUTp, 1), jnp.float32).at[:OUT, 0].set(b2.astype(jnp.float32))
    return (w1t, b1t, w2t, b2t, OUT)


def _choose_tiling(B, batch_tile):
    """Pick (tb, grid): a single full-array block for small B, otherwise
    128-aligned batch tiles with an even grid so v7x's two TensorCores stay
    balanced (no effect on single-core v5e/v6e)."""
    if B <= 128:
        return B, 1                              # block == full array, always legal
    batch_tile = _round_up(max(batch_tile, 128), 128)
    half = _round_up(pl.cdiv(B, 2), 128)
    if half <= batch_tile:
        return half, 2                           # one balanced step per v7x core
    grid = pl.cdiv(B, batch_tile)
    grid += grid % 2                             # keep the grid even
    return batch_tile, grid


def mlp_forward(x, params, *, batch_tile=1024):
    """x: (B, 10) f32 -> (B, 2) f32, matching relu(x @ W1 + b1) @ W2 + b2."""
    w1t, b1t, w2t, b2t, OUT = params
    B, IN = x.shape
    Hp, IN_w = w1t.shape
    assert IN == IN_w, f"expected {IN_w} input features, got {IN}"
    OUTp = w2t.shape[0]

    tb, grid = _choose_tiling(B, batch_tile)
    Bp = tb * grid

    # Feature-major activations (batch on the lane axis); pad + bf16 cast in a
    # single wrapper op only when batch padding is actually needed.
    xT = x.T.astype(jnp.bfloat16)
    if Bp != B:
        xT = jnp.zeros((IN, Bp), jnp.bfloat16).at[:, :B].set(xT)

    flops = 2 * Bp * (IN * Hp + Hp * OUTp)
    bytes_accessed = (xT.size * 2 + w1t.size * 2 + w2t.size * 2
                      + b1t.size * 4 + b2t.size * 4 + OUTp * Bp * 4)

    vmem = pltpu.MemorySpace.VMEM
    out_t = pl.pallas_call(
        mlp_kernel,
        out_shape=jax.ShapeDtypeStruct((OUTp, Bp), jnp.float32),
        grid=(grid,),
        in_specs=[
            pl.BlockSpec((IN, tb), lambda i: (0, i), memory_space=vmem),
            pl.BlockSpec((Hp, IN), lambda i: (0, 0), memory_space=vmem),
            pl.BlockSpec((Hp, 1), lambda i: (0, 0), memory_space=vmem),
            pl.BlockSpec((OUTp, Hp), lambda i: (0, 0), memory_space=vmem),
            pl.BlockSpec((OUTp, 1), lambda i: (0, 0), memory_space=vmem),
        ],
        out_specs=pl.BlockSpec((OUTp, tb), lambda i: (0, i), memory_space=vmem),
        compiler_params=pltpu.CompilerParams(
            dimension_semantics=("parallel",),
            vmem_limit_bytes=32 * 1024 * 1024,
        ),
        cost_estimate=pl.CostEstimate(
            flops=flops, transcendentals=0, bytes_accessed=bytes_accessed),
    )(xT, w1t, b1t, w2t, b2t)

    # Contiguous 2-row slice of the feature-major output, then a tiny transpose
    # back to (B, OUT).
    return out_t[:OUT, :B].T


def init_params(key, in_dim=10, hidden=500, out_dim=2):
    """Deterministic init mimicking PyTorch nn.Linear (uniform +-1/sqrt(fan_in))."""
    k1, k2, k3, k4 = jax.random.split(key, 4)
    bound1 = 1.0 / jnp.sqrt(in_dim)
    bound2 = 1.0 / jnp.sqrt(hidden)
    w1 = jax.random.uniform(k1, (in_dim, hidden), jnp.float32, -bound1, bound1)
    b1 = jax.random.uniform(k2, (hidden,), jnp.float32, -bound1, bound1)
    w2 = jax.random.uniform(k3, (hidden, out_dim), jnp.float32, -bound2, bound2)
    b2 = jax.random.uniform(k4, (out_dim,), jnp.float32, -bound2, bound2)
    return w1, b1, w2, b2


if __name__ == "__main__":
    key = jax.random.PRNGKey(0)
    kx, kx2, kp = jax.random.split(key, 3)

    IN, H, OUT = 10, 500, 2
    w1, b1, w2, b2 = init_params(kp, IN, H, OUT)
    params = prepare_params(w1, b1, w2, b2)   # one-time weight prep (hot-path free)

    def ref_fn(xr):
        return jnp.maximum(xr @ w1 + b1, 0.0) @ w2 + b2

    # Small batch: single grid step (block == full array path).
    B = 8
    x = jax.random.normal(kx, (B, IN), jnp.float32)
    out = mlp_forward(x, params)
    jax.block_until_ready(out)
    assert out.shape == (B, OUT)
    # bf16 matmul operands (f32 accumulation) -> loosened tolerance vs f32 reference.
    assert jnp.allclose(out, ref_fn(x), atol=5e-2, rtol=5e-2)

    # Medium batch: exercises the tiled, balanced (even) grid and batch padding.
    B2 = 300
    x2 = jax.random.normal(kx2, (B2, IN), jnp.float32)
    out2 = mlp_forward(x2, params)
    jax.block_until_ready(out2)
    assert out2.shape == (B2, OUT)
    assert jnp.allclose(out2, ref_fn(x2), atol=5e-2, rtol=5e-2)

    print("KERNEL_OK")
</pallas_src>

<mosaic_0001>
module attributes {stable_mosaic.version = 11 : i64} {
  func.func @mlp_kernel(%arg0: i32, %arg1: memref<10x8xbf16, #tpu.memory_space<vmem>>, %arg2: memref<512x10xbf16, #tpu.memory_space<vmem>>, %arg3: memref<512x1xf32, #tpu.memory_space<vmem>>, %arg4: memref<8x512xbf16, #tpu.memory_space<vmem>>, %arg5: memref<8x1xf32, #tpu.memory_space<vmem>>, %arg6: memref<8x8xf32, #tpu.memory_space<vmem>>) attributes {dimension_semantics = [#tpu.dimension_semantics<parallel>], iteration_bounds = array<i64: 1>, scalar_prefetch = 0 : i64, scratch_operands = 0 : i64, tpu.core_type = #tpu.core_type<tc>, window_params = [{transform_indices = @transform_0, window_bounds = array<i64: 10, 8>}, {pipeline_mode = #tpu.pipeline_mode<synchronous>, transform_indices = @transform_1, window_bounds = array<i64: 512, 10>}, {pipeline_mode = #tpu.pipeline_mode<synchronous>, transform_indices = @transform_2, window_bounds = array<i64: 512, 1>}, {pipeline_mode = #tpu.pipeline_mode<synchronous>, transform_indices = @transform_3, window_bounds = array<i64: 8, 512>}, {pipeline_mode = #tpu.pipeline_mode<synchronous>, transform_indices = @transform_4, window_bounds = array<i64: 8, 1>}, {transform_indices = @transform_5, window_bounds = array<i64: 8, 8>}]} {
    %c0 = arith.constant 0 : index
    %c0_0 = arith.constant 0 : index
    %0 = vector.load %arg2[%c0, %c0_0] : memref<512x10xbf16, #tpu.memory_space<vmem>>, vector<512x10xbf16>
    %c0_1 = arith.constant 0 : index
    %c0_2 = arith.constant 0 : index
    %1 = vector.load %arg1[%c0_1, %c0_2] : memref<10x8xbf16, #tpu.memory_space<vmem>>, vector<10x8xbf16>
    %cst = arith.constant dense<0.000000e+00> : vector<512x8xf32>
    %2 = tpu.matmul %0, %1, %cst {dimension_numbers = #tpu.dot_dimension_numbers<[1], [0], [0], [1], [0, 0, 1, 1], [], []>} : vector<512x10xbf16>, vector<10x8xbf16>, vector<512x8xf32> -> vector<512x8xf32>
    %c0_3 = arith.constant 0 : index
    %c0_4 = arith.constant 0 : index
    %3 = vector.load %arg3[%c0_3, %c0_4] : memref<512x1xf32, #tpu.memory_space<vmem>>, vector<512x1xf32>
    %4 = vector.broadcast %3 : vector<512x1xf32> to vector<512x8xf32>
    %5 = arith.addf %2, %4 : vector<512x8xf32>
    %cst_5 = arith.constant 0.000000e+00 : f32
    %6 = vector.broadcast %cst_5 : f32 to vector<512x8xf32>
    %7 = arith.maximumf %5, %6 : vector<512x8xf32>
    %8 = arith.truncf %7 : vector<512x8xf32> to vector<512x8xbf16>
    %c0_6 = arith.constant 0 : index
    %c0_7 = arith.constant 0 : index
    %9 = vector.load %arg4[%c0_6, %c0_7] : memref<8x512xbf16, #tpu.memory_space<vmem>>, vector<8x512xbf16>
    %cst_8 = arith.constant dense<0.000000e+00> : vector<8x8xf32>
    %10 = tpu.matmul %9, %8, %cst_8 {dimension_numbers = #tpu.dot_dimension_numbers<[1], [0], [0], [1], [0, 0, 1, 1], [], []>} : vector<8x512xbf16>, vector<512x8xbf16>, vector<8x8xf32> -> vector<8x8xf32>
    %c0_9 = arith.constant 0 : index
    %c0_10 = arith.constant 0 : index
    %11 = vector.load %arg5[%c0_9, %c0_10] : memref<8x1xf32, #tpu.memory_space<vmem>>, vector<8x1xf32>
    %12 = vector.broadcast %11 : vector<8x1xf32> to vector<8x8xf32>
    %13 = arith.addf %10, %12 : vector<8x8xf32>
    %c0_11 = arith.constant 0 : index
    %c0_12 = arith.constant 0 : index
    %14 = vector.load %arg6[%c0_11, %c0_12] : memref<8x8xf32, #tpu.memory_space<vmem>>, vector<8x8xf32>
    tpu.vector_store %arg6[%c0_11, %c0_12], %13 {strides = array<i32>} : memref<8x8xf32, #tpu.memory_space<vmem>>, vector<8x8xf32>,
    return
  }
  func.func @transform_0(%arg0: i32) -> (i32, i32) {
    %c0_i32 = arith.constant 0 : i32
    %c0_i32_0 = arith.constant 0 : i32
    return %c0_i32, %arg0 : i32, i32
  }
  func.func @transform_1(%arg0: i32) -> (i32, i32) {
    %c0_i32 = arith.constant 0 : i32
    %c0_i32_0 = arith.constant 0 : i32
    %c0_i32_1 = arith.constant 0 : i32
    return %c0_i32, %c0_i32_0 : i32, i32
  }
  func.func @transform_2(%arg0: i32) -> (i32, i32) {
    %c0_i32 = arith.constant 0 : i32
    %c0_i32_0 = arith.constant 0 : i32
    %c0_i32_1 = arith.constant 0 : i32
    return %c0_i32, %c0_i32_0 : i32, i32
  }
  func.func @transform_3(%arg0: i32) -> (i32, i32) {
    %c0_i32 = arith.constant 0 : i32
    %c0_i32_0 = arith.constant 0 : i32
    %c0_i32_1 = arith.constant 0 : i32
    return %c0_i32, %c0_i32_0 : i32, i32
  }
  func.func @transform_4(%arg0: i32) -> (i32, i32) {
    %c0_i32 = arith.constant 0 : i32
    %c0_i32_0 = arith.constant 0 : i32
    %c0_i32_1 = arith.constant 0 : i32
    return %c0_i32, %c0_i32_0 : i32, i32
  }
  func.func @transform_5(%arg0: i32) -> (i32, i32) {
    %c0_i32 = arith.constant 0 : i32
    %c0_i32_0 = arith.constant 0 : i32
    return %c0_i32, %arg0 : i32, i32
  }
}

</mosaic_0001>

<llo_original>
// kernel: tpu_custom_call.1
$region0: #{tpu_custom_call.1}
  #allocation0 [shape = 'u32[]', space=smem, size = 0x4, offset = 0x4, fixed_abs, tag = 'smem constant byte address 0x4 - core index']
  #allocation1 [shape = 'u32[144,128]{1,0:T(1,128)}', space=vmem, size = 0x12000, scoped, tag = 'internal scratch']
  %s0 = inlined_call_operand.vmem [shape: bf16[10,8], index: 0, kind: input, shape index: {}]
  %s1 = inlined_call_operand.vmem [shape: bf16[512,10], index: 1, kind: input, shape index: {}]
  %s2 = inlined_call_operand.vmem [shape: f32[512,1], index: 2, kind: input, shape index: {}]
  %s3 = inlined_call_operand.vmem [shape: bf16[8,512], index: 3, kind: input, shape index: {}]
  %s4 = inlined_call_operand.vmem [shape: f32[8,1], index: 4, kind: input, shape index: {}]
  %s5 = inlined_call_operand.hbm [shape: f32[8,8], index: 5, kind: output, shape index: {}]
  %s6 = sld [smem:[#allocation0]]
  $region30: #{tpu_custom_call.1} parent=0
    _
  %s8 = ssub.s32 1, %s6
  %s9 = scalar_select 0, %s8, %s6
  $region1: #{tpu_custom_call.1} parent=0
    #allocation2 [shape = 'u8[4096]{0}', space=vmem, size = 0x1000, scoped, tag = 'output window, operand 0, single buffered']
    #allocation3 [shape = 's32[1]{0}', space=sflag, size = 0x4, scoped, tag = 'scoped memory for tpu_custom_call.1']
    %10 = vsyncpa [#allocation3], 0
    // Predicated region
    $region2: #{tpu_custom_call.1} parent=1 // pred_check
      _
    $region3: #{tpu_custom_call.1} parent=1 // pred_check_branch
      %12 = sbr.rel (0) target = $region5
    $region4: #{tpu_custom_call.1} parent=1 // pred_region
      _
    $region5: #{tpu_custom_call.1} parent=1 // pred_fallthru
      _
    // Predicated region
    $region6: #{tpu_custom_call.1} parent=1 // pred_check
      _
    $region7: #{tpu_custom_call.1} parent=1 // pred_check_branch
      %14 = sbr.rel (0) target = $region9
    $region8: #{tpu_custom_call.1} parent=1 // pred_region
      _
    $region9: #{tpu_custom_call.1} parent=1 // pred_fallthru
      _
    // Predicated region
    $region10: #{tpu_custom_call.1} parent=1 // pred_check
      _
    $region11: #{tpu_custom_call.1} parent=1 // pred_check_branch
      %16 = sbr.rel (0) target = $region13
    $region12: #{tpu_custom_call.1} parent=1 // pred_region
      _
    $region13: #{tpu_custom_call.1} parent=1 // pred_fallthru
      _
    // Predicated region
    $region14: #{tpu_custom_call.1} parent=1 // pred_check
      _
    $region15: #{tpu_custom_call.1} parent=1 // pred_check_branch
      %18 = sbr.rel (0) target = $region17
    $region16: #{tpu_custom_call.1} parent=1 // pred_region
      _
    $region17: #{tpu_custom_call.1} parent=1 // pred_fallthru
      _
    // Predicated region
    $region18: #{tpu_custom_call.1} parent=1 // pred_check
      _
    $region19: #{tpu_custom_call.1} parent=1 // pred_check_branch
      %20 = sbr.rel (0) target = $region21
    $region20: #{tpu_custom_call.1} parent=1 // pred_region
      _
    $region21: #{tpu_custom_call.1} parent=1 // pred_fallthru
      _
    %v22 = vld [vmem:[%s1] sm:$0xf]
    %v23 = vld [vmem:[%s1 + $0x4] sm:$0xf]
    %v24 = vld [vmem:[%s1 + $0x8] sm:$0xf]
    %v25 = vld [vmem:[%s1 + $0xc] sm:$0xf]
    %v26 = vld [vmem:[%s1 + $0x10] sm:$0xf]
    %v27 = vld [vmem:[%s1 + $0x14] sm:$0xf]
    %v28 = vld [vmem:[%s1 + $0x18] sm:$0xf]
    %v29 = vld [vmem:[%s1 + $0x1c] sm:$0xf]
    %v30 = vld [vmem:[%s1 + $0x20] sm:$0xf]
    %v31 = vld [vmem:[%s1 + $0x24] sm:$0xf]
    %v32 = vld [vmem:[%s1 + $0x28] sm:$0xf]
    %v33 = vld [vmem:[%s1 + $0x2c] sm:$0xf]
    %v34 = vld [vmem:[%s1 + $0x30] sm:$0xf]
    %v35 = vld [vmem:[%s1 + $0x34] sm:$0xf]
    %v36 = vld [vmem:[%s1 + $0x38] sm:$0xf]
    %v37 = vld [vmem:[%s1 + $0x3c] sm:$0xf]
    %v38 = vld [vmem:[%s1 + $0x40] sm:$0xf]
    %v39 = vld [vmem:[%s1 + $0x44] sm:$0xf]
    %v40 = vld [vmem:[%s1 + $0x48] sm:$0xf]
    %v41 = vld [vmem:[%s1 + $0x4c] sm:$0xf]
    %v42 = vld [vmem:[%s1 + $0x50] sm:$0xf]
    %v43 = vld [vmem:[%s1 + $0x54] sm:$0xf]
    %v44 = vld [vmem:[%s1 + $0x58] sm:$0xf]
    %v45 = vld [vmem:[%s1 + $0x5c] sm:$0xf]
    %v46 = vld [vmem:[%s1 + $0x60] sm:$0xf]
    %v47 = vld [vmem:[%s1 + $0x64] sm:$0xf]
    %v48 = vld [vmem:[%s1 + $0x68] sm:$0xf]
    %v49 = vld [vmem:[%s1 + $0x6c] sm:$0xf]
    %v50 = vld [vmem:[%s1 + $0x70] sm:$0xf]
    %v51 = vld [vmem:[%s1 + $0x74] sm:$0xf]
    %v52 = vld [vmem:[%s1 + $0x78] sm:$0xf]
    %v53 = vld [vmem:[%s1 + $0x7c] sm:$0xf]
    %v54 = vld [vmem:[%s1 + $0x80] sm:$0xf]
    %v55 = vld [vmem:[%s1 + $0x84] sm:$0xf]
    %v56 = vld [vmem:[%s1 + $0x88] sm:$0xf]
    %v57 = vld [vmem:[%s1 + $0x8c] sm:$0xf]
    %v58 = vld [vmem:[%s1 + $0x90] sm:$0xf]
    %v59 = vld [vmem:[%s1 + $0x94] sm:$0xf]
    %v60 = vld [vmem:[%s1 + $0x98] sm:$0xf]
    %v61 = vld [vmem:[%s1 + $0x9c] sm:$0xf]
    %v62 = vld [vmem:[%s1 + $0xa0] sm:$0xf]
    %v63 = vld [vmem:[%s1 + $0xa4] sm:$0xf]
    %v64 = vld [vmem:[%s1 + $0xa8] sm:$0xf]
    %v65 = vld [vmem:[%s1 + $0xac] sm:$0xf]
    %v66 = vld [vmem:[%s1 + $0xb0] sm:$0xf]
    %v67 = vld [vmem:[%s1 + $0xb4] sm:$0xf]
    %v68 = vld [vmem:[%s1 + $0xb8] sm:$0xf]
    %v69 = vld [vmem:[%s1 + $0xbc] sm:$0xf]
    %v70 = vld [vmem:[%s1 + $0xc0] sm:$0xf]
    %v71 = vld [vmem:[%s1 + $0xc4] sm:$0xf]
    %v72 = vld [vmem:[%s1 + $0xc8] sm:$0xf]
    %v73 = vld [vmem:[%s1 + $0xcc] sm:$0xf]
    %v74 = vld [vmem:[%s1 + $0xd0] sm:$0xf]
    %v75 = vld [vmem:[%s1 + $0xd4] sm:$0xf]
    %v76 = vld [vmem:[%s1 + $0xd8] sm:$0xf]
    %v77 = vld [vmem:[%s1 + $0xdc] sm:$0xf]
    %v78 = vld [vmem:[%s1 + $0xe0] sm:$0xf]
    %v79 = vld [vmem:[%s1 + $0xe4] sm:$0xf]
    %v80 = vld [vmem:[%s1 + $0xe8] sm:$0xf]
    %v81 = vld [vmem:[%s1 + $0xec] sm:$0xf]
    %v82 = vld [vmem:[%s1 + $0xf0] sm:$0xf]
    %v83 = vld [vmem:[%s1 + $0xf4] sm:$0xf]
    %v84 = vld [vmem:[%s1 + $0xf8] sm:$0xf]
    %v85 = vld [vmem:[%s1 + $0xfc] sm:$0xf]
    %v86 = vld [vmem:[%s0] sm:$0xf]
    %v87 = vld [vmem:[%s0 + $0x4] sm:$0x1]
    %v88 = vld [vmem:[%s2] sm:$0xff]
    %v89 = vld [vmem:[%s2 + $0x8] sm:$0xff]
    %v90 = vld [vmem:[%s2 + $0x10] sm:$0xff]
    %v91 = vld [vmem:[%s2 + $0x18] sm:$0xff]
    %v92 = vld [vmem:[%s2 + $0x20] sm:$0xff]
    %v93 = vld [vmem:[%s2 + $0x28] sm:$0xff]
    %v94 = vld [vmem:[%s2 + $0x30] sm:$0xff]
    %v95 = vld [vmem:[%s2 + $0x38] sm:$0xff]
    %v96 = vld [vmem:[%s2 + $0x40] sm:$0xff]
    %v97 = vld [vmem:[%s2 + $0x48] sm:$0xff]
    %v98 = vld [vmem:[%s2 + $0x50] sm:$0xff]
    %v99 = vld [vmem:[%s2 + $0x58] sm:$0xff]
    %v100 = vld [vmem:[%s2 + $0x60] sm:$0xff]
    %v101 = vld [vmem:[%s2 + $0x68] sm:$0xff]
    %v102 = vld [vmem:[%s2 + $0x70] sm:$0xff]
    %v103 = vld [vmem:[%s2 + $0x78] sm:$0xff]
    %v104 = vld [vmem:[%s2 + $0x80] sm:$0xff]
    %v105 = vld [vmem:[%s2 + $0x88] sm:$0xff]
    %v106 = vld [vmem:[%s2 + $0x90] sm:$0xff]
    %v107 = vld [vmem:[%s2 + $0x98] sm:$0xff]
    %v108 = vld [vmem:[%s2 + $0xa0] sm:$0xff]
    %v109 = vld [vmem:[%s2 + $0xa8] sm:$0xff]
    %v110 = vld [vmem:[%s2 + $0xb0] sm:$0xff]
    %v111 = vld [vmem:[%s2 + $0xb8] sm:$0xff]
    %v112 = vld [vmem:[%s2 + $0xc0] sm:$0xff]
    %v113 = vld [vmem:[%s2 + $0xc8] sm:$0xff]
    %v114 = vld [vmem:[%s2 + $0xd0] sm:$0xff]
    %v115 = vld [vmem:[%s2 + $0xd8] sm:$0xff]
    %v116 = vld [vmem:[%s2 + $0xe0] sm:$0xff]
    %v117 = vld [vmem:[%s2 + $0xe8] sm:$0xff]
    %v118 = vld [vmem:[%s2 + $0xf0] sm:$0xff]
    %v119 = vld [vmem:[%s2 + $0xf8] sm:$0xff]
    %v120 = vld [vmem:[%s2 + $0x100] sm:$0xff]
    %v121 = vld [vmem:[%s2 + $0x108] sm:$0xff]
    %v122 = vld [vmem:[%s2 + $0x110] sm:$0xff]
    %v123 = vld [vmem:[%s2 + $0x118] sm:$0xff]
    %v124 = vld [vmem:[%s2 + $0x120] sm:$0xff]
    %v125 = vld [vmem:[%s2 + $0x128] sm:$0xff]
    %v126 = vld [vmem:[%s2 + $0x130] sm:$0xff]
    %v127 = vld [vmem:[%s2 + $0x138] sm:$0xff]
    %v128 = vld [vmem:[%s2 + $0x140] sm:$0xff]
    %v129 = vld [vmem:[%s2 + $0x148] sm:$0xff]
    %v130 = vld [vmem:[%s2 + $0x150] sm:$0xff]
    %v131 = vld [vmem:[%s2 + $0x158] sm:$0xff]
    %v132 = vld [vmem:[%s2 + $0x160] sm:$0xff]
    %v133 = vld [vmem:[%s2 + $0x168] sm:$0xff]
    %v134 = vld [vmem:[%s2 + $0x170] sm:$0xff]
    %v135 = vld [vmem:[%s2 + $0x178] sm:$0xff]
    %v136 = vld [vmem:[%s2 + $0x180] sm:$0xff]
    %v137 = vld [vmem:[%s2 + $0x188] sm:$0xff]
    %v138 = vld [vmem:[%s2 + $0x190] sm:$0xff]
    %v139 = vld [vmem:[%s2 + $0x198] sm:$0xff]
    %v140 = vld [vmem:[%s2 + $0x1a0] sm:$0xff]
    %v141 = vld [vmem:[%s2 + $0x1a8] sm:$0xff]
    %v142 = vld [vmem:[%s2 + $0x1b0] sm:$0xff]
    %v143 = vld [vmem:[%s2 + $0x1b8] sm:$0xff]
    %v144 = vld [vmem:[%s2 + $0x1c0] sm:$0xff]
    %v145 = vld [vmem:[%s2 + $0x1c8] sm:$0xff]
    %v146 = vld [vmem:[%s2 + $0x1d0] sm:$0xff]
    %v147 = vld [vmem:[%s2 + $0x1d8] sm:$0xff]
    %v148 = vld [vmem:[%s2 + $0x1e0] sm:$0xff]
    %v149 = vld [vmem:[%s2 + $0x1e8] sm:$0xff]
    %v150 = vld [vmem:[%s2 + $0x1f0] sm:$0xff]
    %v151 = vld [vmem:[%s2 + $0x1f8] sm:$0xff]
    %153 = vset.pattern.permute.xlu0 0
    %154 = vperm.xlu0 %153, %v88
    %v155 = vpop.permute.xlu0 %154
    %158 = vset.pattern.permute.xlu0 0
    %159 = vperm.xlu0 %158, %v89
    %v160 = vpop.permute.xlu0 %159
    %163 = vset.pattern.permute.xlu0 0
    %164 = vperm.xlu0 %163, %v90
    %v165 = vpop.permute.xlu0 %164
    %168 = vset.pattern.permute.xlu0 0
    %169 = vperm.xlu0 %168, %v91
    %v170 = vpop.permute.xlu0 %169
    %173 = vset.pattern.permute.xlu0 0
    %174 = vperm.xlu0 %173, %v92
    %v175 = vpop.permute.xlu0 %174
    %178 = vset.pattern.permute.xlu0 0
    %179 = vperm.xlu0 %178, %v93
    %v180 = vpop.permute.xlu0 %179
    %183 = vset.pattern.permute.xlu0 0
    %184 = vperm.xlu0 %183, %v94
    %v185 = vpop.permute.xlu0 %184
    %188 = vset.pattern.permute.xlu0 0
    %189 = vperm.xlu0 %188, %v95
    %v190 = vpop.permute.xlu0 %189
    %193 = vset.pattern.permute.xlu0 0
    %194 = vperm.xlu0 %193, %v96
    %v195 = vpop.permute.xlu0 %194
    %198 = vset.pattern.permute.xlu0 0
    %199 = vperm.xlu0 %198, %v97
    %v200 = vpop.permute.xlu0 %199
    %203 = vset.pattern.permute.xlu0 0
    %204 = vperm.xlu0 %203, %v98
    %v205 = vpop.permute.xlu0 %204
    %208 = vset.pattern.permute.xlu0 0
    %209 = vperm.xlu0 %208, %v99
    %v210 = vpop.permute.xlu0 %209
    %213 = vset.pattern.permute.xlu0 0
    %214 = vperm.xlu0 %213, %v100
    %v215 = vpop.permute.xlu0 %214
    %218 = vset.pattern.permute.xlu0 0
    %219 = vperm.xlu0 %218, %v101
    %v220 = vpop.permute.xlu0 %219
    %223 = vset.pattern.permute.xlu0 0
    %224 = vperm.xlu0 %223, %v102
    %v225 = vpop.permute.xlu0 %224
    %228 = vset.pattern.permute.xlu0 0
    %229 = vperm.xlu0 %228, %v103
    %v230 = vpop.permute.xlu0 %229
    %233 = vset.pattern.permute.xlu0 0
    %234 = vperm.xlu0 %233, %v104
    %v235 = vpop.permute.xlu0 %234
    %238 = vset.pattern.permute.xlu0 0
    %239 = vperm.xlu0 %238, %v105
    %v240 = vpop.permute.xlu0 %239
    %243 = vset.pattern.permute.xlu0 0
    %244 = vperm.xlu0 %243, %v106
    %v245 = vpop.permute.xlu0 %244
    %248 = vset.pattern.permute.xlu0 0
    %249 = vperm.xlu0 %248, %v107
    %v250 = vpop.permute.xlu0 %249
    %253 = vset.pattern.permute.xlu0 0
    %254 = vperm.xlu0 %253, %v108
    %v255 = vpop.permute.xlu0 %254
    %258 = vset.pattern.permute.xlu0 0
    %259 = vperm.xlu0 %258, %v109
    %v260 = vpop.permute.xlu0 %259
    %263 = vset.pattern.permute.xlu0 0
    %264 = vperm.xlu0 %263, %v110
    %v265 = vpop.permute.xlu0 %264
    %268 = vset.pattern.permute.xlu0 0
    %269 = vperm.xlu0 %268, %v111
    %v270 = vpop.permute.xlu0 %269
    %273 = vset.pattern.permute.xlu0 0
    %274 = vperm.xlu0 %273, %v112
    %v275 = vpop.permute.xlu0 %274
    %278 = vset.pattern.permute.xlu0 0
    %279 = vperm.xlu0 %278, %v113
    %v280 = vpop.permute.xlu0 %279
    %283 = vset.pattern.permute.xlu0 0
    %284 = vperm.xlu0 %283, %v114
    %v285 = vpop.permute.xlu0 %284
    %288 = vset.pattern.permute.xlu0 0
    %289 = vperm.xlu0 %288, %v115
    %v290 = vpop.permute.xlu0 %289
    %293 = vset.pattern.permute.xlu0 0
    %294 = vperm.xlu0 %293, %v116
    %v295 = vpop.permute.xlu0 %294
    %298 = vset.pattern.permute.xlu0 0
    %299 = vperm.xlu0 %298, %v117
    %v300 = vpop.permute.xlu0 %299
    %303 = vset.pattern.permute.xlu0 0
    %304 = vperm.xlu0 %303, %v118
    %v305 = vpop.permute.xlu0 %304
    %308 = vset.pattern.permute.xlu0 0
    %309 = vperm.xlu0 %308, %v119
    %v310 = vpop.permute.xlu0 %309
    %313 = vset.pattern.permute.xlu0 0
    %314 = vperm.xlu0 %313, %v120
    %v315 = vpop.permute.xlu0 %314
    %318 = vset.pattern.permute.xlu0 0
    %319 = vperm.xlu0 %318, %v121
    %v320 = vpop.permute.xlu0 %319
    %323 = vset.pattern.permute.xlu0 0
    %324 = vperm.xlu0 %323, %v122
    %v325 = vpop.permute.xlu0 %324
    %328 = vset.pattern.permute.xlu0 0
    %329 = vperm.xlu0 %328, %v123
    %v330 = vpop.permute.xlu0 %329
    %333 = vset.pattern.permute.xlu0 0
    %334 = vperm.xlu0 %333, %v124
    %v335 = vpop.permute.xlu0 %334
    %338 = vset.pattern.permute.xlu0 0
    %339 = vperm.xlu0 %338, %v125
    %v340 = vpop.permute.xlu0 %339
    %343 = vset.pattern.permute.xlu0 0
    %344 = vperm.xlu0 %343, %v126
    %v345 = vpop.permute.xlu0 %344
    %348 = vset.pattern.permute.xlu0 0
    %349 = vperm.xlu0 %348, %v127
    %v350 = vpop.permute.xlu0 %349
    %353 = vset.pattern.permute.xlu0 0
    %354 = vperm.xlu0 %353, %v128
    %v355 = vpop.permute.xlu0 %354
    %358 = vset.pattern.permute.xlu0 0
    %359 = vperm.xlu0 %358, %v129
    %v360 = vpop.permute.xlu0 %359
    %363 = vset.pattern.permute.xlu0 0
    %364 = vperm.xlu0 %363, %v130
    %v365 = vpop.permute.xlu0 %364
    %368 = vset.pattern.permute.xlu0 0
    %369 = vperm.xlu0 %368, %v131
    %v370 = vpop.permute.xlu0 %369
    %373 = vset.pattern.permute.xlu0 0
    %374 = vperm.xlu0 %373, %v132
    %v375 = vpop.permute.xlu0 %374
    %378 = vset.pattern.permute.xlu0 0
    %379 = vperm.xlu0 %378, %v133
    %v380 = vpop.permute.xlu0 %379
    %383 = vset.pattern.permute.xlu0 0
    %384 = vperm.xlu0 %383, %v134
    %v385 = vpop.permute.xlu0 %384
    %388 = vset.pattern.permute.xlu0 0
    %389 = vperm.xlu0 %388, %v135
    %v390 = vpop.permute.xlu0 %389
    %393 = vset.pattern.permute.xlu0 0
    %394 = vperm.xlu0 %393, %v136
    %v395 = vpop.permute.xlu0 %394
    %398 = vset.pattern.permute.xlu0 0
    %399 = vperm.xlu0 %398, %v137
    %v400 = vpop.permute.xlu0 %399
    %403 = vset.pattern.permute.xlu0 0
    %404 = vperm.xlu0 %403, %v138
    %v405 = vpop.permute.xlu0 %404
    %408 = vset.pattern.permute.xlu0 0
    %409 = vperm.xlu0 %408, %v139
    %v410 = vpop.permute.xlu0 %409
    %413 = vset.pattern.permute.xlu0 0
    %414 = vperm.xlu0 %413, %v140
    %v415 = vpop.permute.xlu0 %414
    %418 = vset.pattern.permute.xlu0 0
    %419 = vperm.xlu0 %418, %v141
    %v420 = vpop.permute.xlu0 %419
    %423 = vset.pattern.permute.xlu0 0
    %424 = vperm.xlu0 %423, %v142
    %v425 = vpop.permute.xlu0 %424
    %428 = vset.pattern.permute.xlu0 0
    %429 = vperm.xlu0 %428, %v143
    %v430 = vpop.permute.xlu0 %429
    %433 = vset.pattern.permute.xlu0 0
    %434 = vperm.xlu0 %433, %v144
    %v435 = vpop.permute.xlu0 %434
    %438 = vset.pattern.permute.xlu0 0
    %439 = vperm.xlu0 %438, %v145
    %v440 = vpop.permute.xlu0 %439
    %443 = vset.pattern.permute.xlu0 0
    %444 = vperm.xlu0 %443, %v146
    %v445 = vpop.permute.xlu0 %444
    %448 = vset.pattern.permute.xlu0 0
    %449 = vperm.xlu0 %448, %v147
    %v450 = vpop.permute.xlu0 %449
    %453 = vset.pattern.permute.xlu0 0
    %454 = vperm.xlu0 %453, %v148
    %v455 = vpop.permute.xlu0 %454
    %458 = vset.pattern.permute.xlu0 0
    %459 = vperm.xlu0 %458, %v149
    %v460 = vpop.permute.xlu0 %459
    %463 = vset.pattern.permute.xlu0 0
    %464 = vperm.xlu0 %463, %v150
    %v465 = vpop.permute.xlu0 %464
    %468 = vset.pattern.permute.xlu0 0
    %469 = vperm.xlu0 %468, %v151
    %v470 = vpop.permute.xlu0 %469
    %v536 = vunpack.c.l.b16 %v22
    %v537 = vunpack.c.l.b16 %v23
    %v538 = vunpack.c.l.b16 %v24
    %v539 = vunpack.c.l.b16 %v25
    %v540 = vunpack.c.l.b16 %v26
    %v541 = vunpack.c.l.b16 %v27
    %v542 = vunpack.c.l.b16 %v28
    %v543 = vunpack.c.l.b16 %v29
    %v544 = vunpack.c.l.b16 %v30
    %v545 = vunpack.c.l.b16 %v31
    %v546 = vunpack.c.l.b16 %v32
    %v547 = vunpack.c.l.b16 %v33
    %v548 = vunpack.c.l.b16 %v34
    %v549 = vunpack.c.l.b16 %v35
    %v550 = vunpack.c.l.b16 %v36
    %v551 = vunpack.c.l.b16 %v37
    %v552 = vunpack.c.l.b16 %v38
    %v553 = vunpack.c.l.b16 %v39
    %v554 = vunpack.c.l.b16 %v40
    %v555 = vunpack.c.l.b16 %v41
    %v556 = vunpack.c.l.b16 %v42
    %v557 = vunpack.c.l.b16 %v43
    %v558 = vunpack.c.l.b16 %v44
    %v559 = vunpack.c.l.b16 %v45
    %v560 = vunpack.c.l.b16 %v46
    %v561 = vunpack.c.l.b16 %v47
    %v562 = vunpack.c.l.b16 %v48
    %v563 = vunpack.c.l.b16 %v49
    %v564 = vunpack.c.l.b16 %v50
    %v565 = vunpack.c.l.b16 %v51
    %v566 = vunpack.c.l.b16 %v52
    %v567 = vunpack.c.l.b16 %v53
    %v568 = vunpack.c.l.b16 %v54
    %v569 = vunpack.c.l.b16 %v55
    %v570 = vunpack.c.l.b16 %v56
    %v571 = vunpack.c.l.b16 %v57
    %v572 = vunpack.c.l.b16 %v58
    %v573 = vunpack.c.l.b16 %v59
    %v574 = vunpack.c.l.b16 %v60
    %v575 = vunpack.c.l.b16 %v61
    %v576 = vunpack.c.l.b16 %v62
    %v577 = vunpack.c.l.b16 %v63
    %v578 = vunpack.c.l.b16 %v64
    %v579 = vunpack.c.l.b16 %v65
    %v580 = vunpack.c.l.b16 %v66
    %v581 = vunpack.c.l.b16 %v67
    %v582 = vunpack.c.l.b16 %v68
    %v583 = vunpack.c.l.b16 %v69
    %v584 = vunpack.c.l.b16 %v70
    %v585 = vunpack.c.l.b16 %v71
    %v586 = vunpack.c.l.b16 %v72
    %v587 = vunpack.c.l.b16 %v73
    %v588 = vunpack.c.l.b16 %v74
    %v589 = vunpack.c.l.b16 %v75
    %v590 = vunpack.c.l.b16 %v76
    %v591 = vunpack.c.l.b16 %v77
    %v592 = vunpack.c.l.b16 %v78
    %v593 = vunpack.c.l.b16 %v79
    %v594 = vunpack.c.l.b16 %v80
    %v595 = vunpack.c.l.b16 %v81
    %v596 = vunpack.c.l.b16 %v82
    %v597 = vunpack.c.l.b16 %v83
    %v598 = vunpack.c.l.b16 %v84
    %v599 = vunpack.c.l.b16 %v85
    %v600 = vpack.c.b16 %v537, %v536
    %v601 = vpack.c.b16 %v539, %v538
    %v602 = vpack.c.b16 %v541, %v540
    %v603 = vpack.c.b16 %v543, %v542
    %v604 = vpack.c.b16 %v545, %v544
    %v605 = vpack.c.b16 %v547, %v546
    %v606 = vpack.c.b16 %v549, %v548
    %v607 = vpack.c.b16 %v551, %v550
    %v608 = vpack.c.b16 %v553, %v552
    %v609 = vpack.c.b16 %v555, %v554
    %v610 = vpack.c.b16 %v557, %v556
    %v611 = vpack.c.b16 %v559, %v558
    %v612 = vpack.c.b16 %v561, %v560
    %v613 = vpack.c.b16 %v563, %v562
    %v614 = vpack.c.b16 %v565, %v564
    %v615 = vpack.c.b16 %v567, %v566
    %v616 = vpack.c.b16 %v569, %v568
    %v617 = vpack.c.b16 %v571, %v570
    %v618 = vpack.c.b16 %v573, %v572
    %v619 = vpack.c.b16 %v575, %v574
    %v620 = vpack.c.b16 %v577, %v576
    %v621 = vpack.c.b16 %v579, %v578
    %v622 = vpack.c.b16 %v581, %v580
    %v623 = vpack.c.b16 %v583, %v582
    %v624 = vpack.c.b16 %v585, %v584
    %v625 = vpack.c.b16 %v587, %v586
    %v626 = vpack.c.b16 %v589, %v588
    %v627 = vpack.c.b16 %v591, %v590
    %v628 = vpack.c.b16 %v593, %v592
    %v629 = vpack.c.b16 %v595, %v594
    %v630 = vpack.c.b16 %v597, %v596
    %v631 = vpack.c.b16 %v599, %v598
    %v634 = vunpack.c.l.b16 %v86
    %v635 = vunpack.c.l.b16 %v87
    %v636 = vpack.c.b16 %v635, %v634
    %vm637 = vcmask 80896
    %v639 = vsel %vm637, %v600, 0
    %v642 = vsel %vm637, %v601, 0
    %v645 = vsel %vm637, %v602, 0
    %v648 = vsel %vm637, %v603, 0
    %v651 = vsel %vm637, %v604, 0
    %v654 = vsel %vm637, %v605, 0
    %v657 = vsel %vm637, %v606, 0
    %v660 = vsel %vm637, %v607, 0
    %v663 = vsel %vm637, %v608, 0
    %v666 = vsel %vm637, %v609, 0
    %v669 = vsel %vm637, %v610, 0
    %v672 = vsel %vm637, %v611, 0
    %v675 = vsel %vm637, %v612, 0
    %v678 = vsel %vm637, %v613, 0
    %v681 = vsel %vm637, %v614, 0
    %v684 = vsel %vm637, %v615, 0
    %v687 = vsel %vm637, %v616, 0
    %v690 = vsel %vm637, %v617, 0
    %v693 = vsel %vm637, %v618, 0
    %v696 = vsel %vm637, %v619, 0
    %v699 = vsel %vm637, %v620, 0
    %v702 = vsel %vm637, %v621, 0
    %v705 = vsel %vm637, %v622, 0
    %v708 = vsel %vm637, %v623, 0
    %v711 = vsel %vm637, %v624, 0
    %v714 = vsel %vm637, %v625, 0
    %v717 = vsel %vm637, %v626, 0
    %v720 = vsel %vm637, %v627, 0
    %v723 = vsel %vm637, %v628, 0
    %v726 = vsel %vm637, %v629, 0
    %v729 = vsel %vm637, %v630, 0
    %v732 = vsel %vm637, %v631, 0
    %vm734 = vcmask 1044480
    %v736 = vsel %vm734, %v636, 0
    %738 = vmatprep.subr.bf16.mxu0 0
    %739 = vmatpush1.bf16.msra.mxu0 0
    %740 = vmatprep.subr.bf16.mxu0 0
    %741 = vmatpush1.bf16.msra.mxu0 0
    %742 = vmatprep.subr.bf16.mxu0 0
    %743 = vmatpush1.bf16.msra.mxu0 0
    %744 = vmatprep.subr.bf16.mxu0 0
    %745 = vmatpush1.bf16.msra.mxu0 0
    %746 = vmatprep.subr.bf16.mxu0 0
    %747 = vmatpush1.bf16.msra.mxu0 0
    %748 = vmatprep.subr.bf16.mxu0 0
    %749 = vmatpush1.bf16.msra.mxu0 0
    %750 = vmatprep.subr.bf16.mxu0 0
    %751 = vmatpush1.bf16.msra.mxu0 0
    %752 = vmatprep.subr.bf16.mxu0 0
    %753 = vmatpush1.bf16.msra.mxu0 %v736
    %754 = vmatprep.subr.bf16.mxu0 0
    %755 = vmatpush2.bf16.msra.mxu0 0
    %756 = vmatprep.subr.bf16.mxu0 0
    %757 = vmatpush2.bf16.msra.mxu0 0
    %758 = vmatprep.subr.bf16.mxu0 0
    %759 = vmatpush2.bf16.msra.mxu0 0
    %760 = vmatprep.subr.bf16.mxu0 0
    %761 = vmatpush2.bf16.msra.mxu0 0
    %762 = vmatprep.subr.bf16.mxu0 0
    %763 = vmatpush2.bf16.msra.mxu0 0
    %764 = vmatprep.subr.bf16.mxu0 0
    %765 = vmatpush2.bf16.msra.mxu0 0
    %766 = vmatprep.subr.bf16.mxu0 0
    %767 = vmatpush2.bf16.msra.mxu0 0
    %768 = vmatprep.subr.bf16.mxu0 0
    %769 = vmatpush2.bf16.msra.mxu0 0
    %770 = vmatprep.mubr.bf16.mxu0 0
    %771 = vmatmul.mubr.bf16.gmra.mxu0 %v639
    %v772 = vpop.f32.mrf.mxu0
    %v773 = vadd.f32 %v155, %v772
    %v774 = vpop.f32.mrf.mxu0
    %v775 = vpop.f32.mrf.mxu0
    %v776 = vadd.f32 %v160, %v775
    %v777 = vpop.f32.mrf.mxu0
    %778 = vmatprep.mubr.bf16.mxu0 0
    %779 = vmatmul.mubr.bf16.gmra.mxu0 %v642
    %v780 = vpop.f32.mrf.mxu0
    %v781 = vadd.f32 %v165, %v780
    %v782 = vpop.f32.mrf.mxu0
    %v783 = vpop.f32.mrf.mxu0
    %v784 = vadd.f32 %v170, %v783
    %v785 = vpop.f32.mrf.mxu0
    %786 = vmatprep.mubr.bf16.mxu0 0
    %787 = vmatmul.mubr.bf16.gmra.mxu0 %v645
    %v788 = vpop.f32.mrf.mxu0
    %v789 = vadd.f32 %v175, %v788
    %v790 = vpop.f32.mrf.mxu0
    %v791 = vpop.f32.mrf.mxu0
    %v792 = vadd.f32 %v180, %v791
    %v793 = vpop.f32.mrf.mxu0
    %794 = vmatprep.mubr.bf16.mxu0 0
    %795 = vmatmul.mubr.bf16.gmra.mxu0 %v648
    %v796 = vpop.f32.mrf.mxu0
    %v797 = vadd.f32 %v185, %v796
    %v798 = vpop.f32.mrf.mxu0
    %v799 = vpop.f32.mrf.mxu0
    %v800 = vadd.f32 %v190, %v799
    %v801 = vpop.f32.mrf.mxu0
    %802 = vmatprep.mubr.bf16.mxu0 0
    %803 = vmatmul.mubr.bf16.gmra.mxu0 %v651
    %v804 = vpop.f32.mrf.mxu0
    %v805 = vadd.f32 %v195, %v804
    %v806 = vpop.f32.mrf.mxu0
    %v807 = vpop.f32.mrf.mxu0
    %v808 = vadd.f32 %v200, %v807
    %v809 = vpop.f32.mrf.mxu0
    %810 = vmatprep.mubr.bf16.mxu0 0
    %811 = vmatmul.mubr.bf16.gmra.mxu0 %v654
    %v812 = vpop.f32.mrf.mxu0
    %v813 = vadd.f32 %v205, %v812
    %v814 = vpop.f32.mrf.mxu0
    %v815 = vpop.f32.mrf.mxu0
    %v816 = vadd.f32 %v210, %v815
    %v817 = vpop.f32.mrf.mxu0
    %818 = vmatprep.mubr.bf16.mxu0 0
    %819 = vmatmul.mubr.bf16.gmra.mxu0 %v657
    %v820 = vpop.f32.mrf.mxu0
    %v821 = vadd.f32 %v215, %v820
    %v822 = vpop.f32.mrf.mxu0
    %v823 = vpop.f32.mrf.mxu0
    %v824 = vadd.f32 %v220, %v823
    %v825 = vpop.f32.mrf.mxu0
    %826 = vmatprep.mubr.bf16.mxu0 0
    %827 = vmatmul.mubr.bf16.gmra.mxu0 %v660
    %v828 = vpop.f32.mrf.mxu0
    %v829 = vadd.f32 %v225, %v828
    %v830 = vpop.f32.mrf.mxu0
    %v831 = vpop.f32.mrf.mxu0
    %v832 = vadd.f32 %v230, %v831
    %v833 = vpop.f32.mrf.mxu0
    %834 = vmatprep.mubr.bf16.mxu0 0
    %835 = vmatmul.mubr.bf16.gmra.mxu0 %v663
    %v836 = vpop.f32.mrf.mxu0
    %v837 = vadd.f32 %v235, %v836
    %v838 = vpop.f32.mrf.mxu0
    %v839 = vpop.f32.mrf.mxu0
    %v840 = vadd.f32 %v240, %v839
    %v841 = vpop.f32.mrf.mxu0
    %842 = vmatprep.mubr.bf16.mxu0 0
    %843 = vmatmul.mubr.bf16.gmra.mxu0 %v666
    %v844 = vpop.f32.mrf.mxu0
    %v845 = vadd.f32 %v245, %v844
    %v846 = vpop.f32.mrf.mxu0
    %v847 = vpop.f32.mrf.mxu0
    %v848 = vadd.f32 %v250, %v847
    %v849 = vpop.f32.mrf.mxu0
    %850 = vmatprep.mubr.bf16.mxu0 0
    %851 = vmatmul.mubr.bf16.gmra.mxu0 %v669
    %v852 = vpop.f32.mrf.mxu0
    %v853 = vadd.f32 %v255, %v852
    %v854 = vpop.f32.mrf.mxu0
    %v855 = vpop.f32.mrf.mxu0
    %v856 = vadd.f32 %v260, %v855
    %v857 = vpop.f32.mrf.mxu0
    %858 = vmatprep.mubr.bf16.mxu0 0
    %859 = vmatmul.mubr.bf16.gmra.mxu0 %v672
    %v860 = vpop.f32.mrf.mxu0
    %v861 = vadd.f32 %v265, %v860
    %v862 = vpop.f32.mrf.mxu0
    %v863 = vpop.f32.mrf.mxu0
    %v864 = vadd.f32 %v270, %v863
    %v865 = vpop.f32.mrf.mxu0
    %866 = vmatprep.mubr.bf16.mxu0 0
    %867 = vmatmul.mubr.bf16.gmra.mxu0 %v675
    %v868 = vpop.f32.mrf.mxu0
    %v869 = vadd.f32 %v275, %v868
    %v870 = vpop.f32.mrf.mxu0
    %v871 = vpop.f32.mrf.mxu0
    %v872 = vadd.f32 %v280, %v871
    %v873 = vpop.f32.mrf.mxu0
    %874 = vmatprep.mubr.bf16.mxu0 0
    %875 = vmatmul.mubr.bf16.gmra.mxu0 %v678
    %v876 = vpop.f32.mrf.mxu0
    %v877 = vadd.f32 %v285, %v876
    %v878 = vpop.f32.mrf.mxu0
    %v879 = vpop.f32.mrf.mxu0
    %v880 = vadd.f32 %v290, %v879
    %v881 = vpop.f32.mrf.mxu0
    %882 = vmatprep.mubr.bf16.mxu0 0
    %883 = vmatmul.mubr.bf16.gmra.mxu0 %v681
    %v884 = vpop.f32.mrf.mxu0
    %v885 = vadd.f32 %v295, %v884
    %v886 = vpop.f32.mrf.mxu0
    %v887 = vpop.f32.mrf.mxu0
    %v888 = vadd.f32 %v300, %v887
    %v889 = vpop.f32.mrf.mxu0
    %890 = vmatprep.mubr.bf16.mxu0 0
    %891 = vmatmul.mubr.bf16.gmra.mxu0 %v684
    %v892 = vpop.f32.mrf.mxu0
    %v893 = vadd.f32 %v305, %v892
    %v894 = vpop.f32.mrf.mxu0
    %v895 = vpop.f32.mrf.mxu0
    %v896 = vadd.f32 %v310, %v895
    %v897 = vpop.f32.mrf.mxu0
    %898 = vmatprep.mubr.bf16.mxu0 0
    %899 = vmatmul.mubr.bf16.gmra.mxu0 %v687
    %v900 = vpop.f32.mrf.mxu0
    %v901 = vadd.f32 %v315, %v900
    %v902 = vpop.f32.mrf.mxu0
    %v903 = vpop.f32.mrf.mxu0
    %v904 = vadd.f32 %v320, %v903
    %v905 = vpop.f32.mrf.mxu0
    %906 = vmatprep.mubr.bf16.mxu0 0
    %907 = vmatmul.mubr.bf16.gmra.mxu0 %v690
    %v908 = vpop.f32.mrf.mxu0
    %v909 = vadd.f32 %v325, %v908
    %v910 = vpop.f32.mrf.mxu0
    %v911 = vpop.f32.mrf.mxu0
    %v912 = vadd.f32 %v330, %v911
    %v913 = vpop.f32.mrf.mxu0
    %914 = vmatprep.mubr.bf16.mxu0 0
    %915 = vmatmul.mubr.bf16.gmra.mxu0 %v693
    %v916 = vpop.f32.mrf.mxu0
    %v917 = vadd.f32 %v335, %v916
    %v918 = vpop.f32.mrf.mxu0
    %v919 = vpop.f32.mrf.mxu0
    %v920 = vadd.f32 %v340, %v919
    %v921 = vpop.f32.mrf.mxu0
    %922 = vmatprep.mubr.bf16.mxu0 0
    %923 = vmatmul.mubr.bf16.gmra.mxu0 %v696
    %v924 = vpop.f32.mrf.mxu0
    %v925 = vadd.f32 %v345, %v924
    %v926 = vpop.f32.mrf.mxu0
    %v927 = vpop.f32.mrf.mxu0
    %v928 = vadd.f32 %v350, %v927
    %v929 = vpop.f32.mrf.mxu0
    %930 = vmatprep.mubr.bf16.mxu0 0
    %931 = vmatmul.mubr.bf16.gmra.mxu0 %v699
    %v932 = vpop.f32.mrf.mxu0
    %v933 = vadd.f32 %v355, %v932
    %v934 = vpop.f32.mrf.mxu0
    %v935 = vpop.f32.mrf.mxu0
    %v936 = vadd.f32 %v360, %v935
    %v937 = vpop.f32.mrf.mxu0
    %938 = vmatprep.mubr.bf16.mxu0 0
    %939 = vmatmul.mubr.bf16.gmra.mxu0 %v702
    %v940 = vpop.f32.mrf.mxu0
    %v941 = vadd.f32 %v365, %v940
    %v942 = vpop.f32.mrf.mxu0
    %v943 = vpop.f32.mrf.mxu0
    %v944 = vadd.f32 %v370, %v943
    %v945 = vpop.f32.mrf.mxu0
    %946 = vmatprep.mubr.bf16.mxu0 0
    %947 = vmatmul.mubr.bf16.gmra.mxu0 %v705
    %v948 = vpop.f32.mrf.mxu0
    %v949 = vadd.f32 %v375, %v948
    %v950 = vpop.f32.mrf.mxu0
    %v951 = vpop.f32.mrf.mxu0
    %v952 = vadd.f32 %v380, %v951
    %v953 = vpop.f32.mrf.mxu0
    %954 = vmatprep.mubr.bf16.mxu0 0
    %955 = vmatmul.mubr.bf16.gmra.mxu0 %v708
    %v956 = vpop.f32.mrf.mxu0
    %v957 = vadd.f32 %v385, %v956
    %v958 = vpop.f32.mrf.mxu0
    %v959 = vpop.f32.mrf.mxu0
    %v960 = vadd.f32 %v390, %v959
    %v961 = vpop.f32.mrf.mxu0
    %962 = vmatprep.mubr.bf16.mxu0 0
    %963 = vmatmul.mubr.bf16.gmra.mxu0 %v711
    %v964 = vpop.f32.mrf.mxu0
    %v965 = vadd.f32 %v395, %v964
    %v966 = vpop.f32.mrf.mxu0
    %v967 = vpop.f32.mrf.mxu0
    %v968 = vadd.f32 %v400, %v967
    %v969 = vpop.f32.mrf.mxu0
    %970 = vmatprep.mubr.bf16.mxu0 0
    %971 = vmatmul.mubr.bf16.gmra.mxu0 %v714
    %v972 = vpop.f32.mrf.mxu0
    %v973 = vadd.f32 %v405, %v972
    %v974 = vpop.f32.mrf.mxu0
    %v975 = vpop.f32.mrf.mxu0
    %v976 = vadd.f32 %v410, %v975
    %v977 = vpop.f32.mrf.mxu0
    %978 = vmatprep.mubr.bf16.mxu0 0
    %979 = vmatmul.mubr.bf16.gmra.mxu0 %v717
    %v980 = vpop.f32.mrf.mxu0
    %v981 = vadd.f32 %v415, %v980
    %v982 = vpop.f32.mrf.mxu0
    %v983 = vpop.f32.mrf.mxu0
    %v984 = vadd.f32 %v420, %v983
    %v985 = vpop.f32.mrf.mxu0
    %986 = vmatprep.mubr.bf16.mxu0 0
    %987 = vmatmul.mubr.bf16.gmra.mxu0 %v720
    %v988 = vpop.f32.mrf.mxu0
    %v989 = vadd.f32 %v425, %v988
    %v990 = vpop.f32.mrf.mxu0
    %v991 = vpop.f32.mrf.mxu0
    %v992 = vadd.f32 %v430, %v991
    %v993 = vpop.f32.mrf.mxu0
    %994 = vmatprep.mubr.bf16.mxu0 0
    %995 = vmatmul.mubr.bf16.gmra.mxu0 %v723
    %v996 = vpop.f32.mrf.mxu0
    %v997 = vadd.f32 %v435, %v996
    %v998 = vpop.f32.mrf.mxu0
    %v999 = vpop.f32.mrf.mxu0
    %v1000 = vadd.f32 %v440, %v999
    %v1001 = vpop.f32.mrf.mxu0
    %1002 = vmatprep.mubr.bf16.mxu0 0
    %1003 = vmatmul.mubr.bf16.gmra.mxu0 %v726
    %v1004 = vpop.f32.mrf.mxu0
    %v1005 = vadd.f32 %v445, %v1004
    %v1006 = vpop.f32.mrf.mxu0
    %v1007 = vpop.f32.mrf.mxu0
    %v1008 = vadd.f32 %v450, %v1007
    %v1009 = vpop.f32.mrf.mxu0
    %1010 = vmatprep.mubr.bf16.mxu0 0
    %1011 = vmatmul.mubr.bf16.gmra.mxu0 %v729
    %v1012 = vpop.f32.mrf.mxu0
    %v1013 = vadd.f32 %v455, %v1012
    %v1014 = vpop.f32.mrf.mxu0
    %v1015 = vpop.f32.mrf.mxu0
    %v1016 = vadd.f32 %v460, %v1015
    %v1017 = vpop.f32.mrf.mxu0
    %1018 = vmatprep.mubr.bf16.mxu0 0
    %1019 = vmatmul.mubr.bf16.gmra.mxu0 %v732
    %v1020 = vpop.f32.mrf.mxu0
    %v1021 = vadd.f32 %v465, %v1020
    %v1022 = vpop.f32.mrf.mxu0
    %v1023 = vpop.f32.mrf.mxu0
    %v1024 = vadd.f32 %v470, %v1023
    %v1025 = vpop.f32.mrf.mxu0
    %1026 = vdwg.mxu0
    %v1027 = vmax.f32 %v773, 0.0
    %v1028 = vmax.f32 %v776, 0.0
    %v1029 = vmax.f32 %v781, 0.0
    %v1030 = vmax.f32 %v784, 0.0
    %v1031 = vmax.f32 %v789, 0.0
    %v1032 = vmax.f32 %v792, 0.0
    %v1033 = vmax.f32 %v797, 0.0
    %v1034 = vmax.f32 %v800, 0.0
    %v1035 = vmax.f32 %v805, 0.0
    %v1036 = vmax.f32 %v808, 0.0
    %v1037 = vmax.f32 %v813, 0.0
    %v1038 = vmax.f32 %v816, 0.0
    %v1039 = vmax.f32 %v821, 0.0
    %v1040 = vmax.f32 %v824, 0.0
    %v1041 = vmax.f32 %v829, 0.0
    %v1042 = vmax.f32 %v832, 0.0
    %v1043 = vmax.f32 %v837, 0.0
    %v1044 = vmax.f32 %v840, 0.0
    %v1045 = vmax.f32 %v845, 0.0
    %v1046 = vmax.f32 %v848, 0.0
    %v1047 = vmax.f32 %v853, 0.0
    %v1048 = vmax.f32 %v856, 0.0
    %v1049 = vmax.f32 %v861, 0.0
    %v1050 = vmax.f32 %v864, 0.0
    %v1051 = vmax.f32 %v869, 0.0
    %v1052 = vmax.f32 %v872, 0.0
    %v1053 = vmax.f32 %v877, 0.0
    %v1054 = vmax.f32 %v880, 0.0
    %v1055 = vmax.f32 %v885, 0.0
    %v1056 = vmax.f32 %v888, 0.0
    %v1057 = vmax.f32 %v893, 0.0
    %v1058 = vmax.f32 %v896, 0.0
    %v1059 = vmax.f32 %v901, 0.0
    %v1060 = vmax.f32 %v904, 0.0
    %v1061 = vmax.f32 %v909, 0.0
    %v1062 = vmax.f32 %v912, 0.0
    %v1063 = vmax.f32 %v917, 0.0
    %v1064 = vmax.f32 %v920, 0.0
    %v1065 = vmax.f32 %v925, 0.0
    %v1066 = vmax.f32 %v928, 0.0
    %v1067 = vmax.f32 %v933, 0.0
    %v1068 = vmax.f32 %v936, 0.0
    %v1069 = vmax.f32 %v941, 0.0
    %v1070 = vmax.f32 %v944, 0.0
    %v1071 = vmax.f32 %v949, 0.0
    %v1072 = vmax.f32 %v952, 0.0
    %v1073 = vmax.f32 %v957, 0.0
    %v1074 = vmax.f32 %v960, 0.0
    %v1075 = vmax.f32 %v965, 0.0
    %v1076 = vmax.f32 %v968, 0.0
    %v1077 = vmax.f32 %v973, 0.0
    %v1078 = vmax.f32 %v976, 0.0
    %v1079 = vmax.f32 %v981, 0.0
    %v1080 = vmax.f32 %v984, 0.0
    %v1081 = vmax.f32 %v989, 0.0
    %v1082 = vmax.f32 %v992, 0.0
    %v1083 = vmax.f32 %v997, 0.0
    %v1084 = vmax.f32 %v1000, 0.0
    %v1085 = vmax.f32 %v1005, 0.0
    %v1086 = vmax.f32 %v1008, 0.0
    %v1087 = vmax.f32 %v1013, 0.0
    %v1088 = vmax.f32 %v1016, 0.0
    %v1089 = vmax.f32 %v1021, 0.0
    %v1090 = vmax.f32 %v1024, 0.0
    %v1091 = vpack.c.bf16 %v1028, %v1027
    %v1092 = vpack.c.bf16 %v1030, %v1029
    %v1093 = vpack.c.bf16 %v1032, %v1031
    %v1094 = vpack.c.bf16 %v1034, %v1033
    %v1095 = vpack.c.bf16 %v1036, %v1035
    %v1096 = vpack.c.bf16 %v1038, %v1037
    %v1097 = vpack.c.bf16 %v1040, %v1039
    %v1098 = vpack.c.bf16 %v1042, %v1041
    %v1099 = vpack.c.bf16 %v1044, %v1043
    %v1100 = vpack.c.bf16 %v1046, %v1045
    %v1101 = vpack.c.bf16 %v1048, %v1047
    %v1102 = vpack.c.bf16 %v1050, %v1049
    %v1103 = vpack.c.bf16 %v1052, %v1051
    %v1104 = vpack.c.bf16 %v1054, %v1053
    %v1105 = vpack.c.bf16 %v1056, %v1055
    %v1106 = vpack.c.bf16 %v1058, %v1057
    %v1107 = vpack.c.bf16 %v1060, %v1059
    %v1108 = vpack.c.bf16 %v1062, %v1061
    %v1109 = vpack.c.bf16 %v1064, %v1063
    %v1110 = vpack.c.bf16 %v1066, %v1065
    %v1111 = vpack.c.bf16 %v1068, %v1067
    %v1112 = vpack.c.bf16 %v1070, %v1069
    %v1113 = vpack.c.bf16 %v1072, %v1071
    %v1114 = vpack.c.bf16 %v1074, %v1073
    %v1115 = vpack.c.bf16 %v1076, %v1075
    %v1116 = vpack.c.bf16 %v1078, %v1077
    %v1117 = vpack.c.bf16 %v1080, %v1079
    %v1118 = vpack.c.bf16 %v1082, %v1081
    %v1119 = vpack.c.bf16 %v1084, %v1083
    %v1120 = vpack.c.bf16 %v1086, %v1085
    %v1121 = vpack.c.bf16 %v1088, %v1087
    %v1122 = vpack.c.bf16 %v1090, %v1089
    %v1123 = vld [vmem:[%s3] sm:$0xff]
    %v1124 = vld [vmem:[%s3 + $0x8] sm:$0xff]
    %v1125 = vld [vmem:[%s4] sm:$0xff]
    %1127 = vset.pattern.permute.xlu0 0
    %1128 = vperm.xlu0 %1127, %v1125
    %v1129 = vpop.permute.xlu0 %1128
    %v1133 = vunpack.c.l.b16 %v1123
    %v1134 = vunpack.c.h.b16 %v1123
    %v1135 = vunpack.c.l.b16 %v1124
    %v1136 = vunpack.c.h.b16 %v1124
    %v1137 = vpack.c.b16 %v1133, %v1133
    %v1138 = vpack.c.b16 %v1134, %v1134
    %v1139 = vpack.c.b16 %v1135, %v1135
    %v1140 = vpack.c.b16 %v1136, %v1136
    %1145 = vmatprep.subr.bf16.mxu0 0
    %1146 = vmatpush1.bf16.msra.mxu0 %v1098
    %1147 = vmatprep.subr.bf16.mxu0 0
    %1148 = vmatpush1.bf16.msra.mxu0 %v1097
    %1149 = vmatprep.subr.bf16.mxu0 0
    %1150 = vmatpush1.bf16.msra.mxu0 %v1096
    %1151 = vmatprep.subr.bf16.mxu0 0
    %1152 = vmatpush1.bf16.msra.mxu0 %v1095
    %1153 = vmatprep.subr.bf16.mxu0 0
    %1154 = vmatpush1.bf16.msra.mxu0 %v1094
    %1155 = vmatprep.subr.bf16.mxu0 0
    %1156 = vmatpush1.bf16.msra.mxu0 %v1093
    %1157 = vmatprep.subr.bf16.mxu0 0
    %1158 = vmatpush1.bf16.msra.mxu0 %v1092
    %1159 = vmatprep.subr.bf16.mxu0 0
    %1160 = vmatpush1.bf16.msra.mxu0 %v1091
    %1161 = vmatprep.subr.bf16.mxu0 0
    %1162 = vmatpush2.bf16.msra.mxu0 %v1106
    %1163 = vmatprep.subr.bf16.mxu0 0
    %1164 = vmatpush2.bf16.msra.mxu0 %v1105
    %1165 = vmatprep.subr.bf16.mxu0 0
    %1166 = vmatpush2.bf16.msra.mxu0 %v1104
    %1167 = vmatprep.subr.bf16.mxu0 0
    %1168 = vmatpush2.bf16.msra.mxu0 %v1103
    %1169 = vmatprep.subr.bf16.mxu0 0
    %1170 = vmatpush2.bf16.msra.mxu0 %v1102
    %1171 = vmatprep.subr.bf16.mxu0 0
    %1172 = vmatpush2.bf16.msra.mxu0 %v1101
    %1173 = vmatprep.subr.bf16.mxu0 0
    %1174 = vmatpush2.bf16.msra.mxu0 %v1100
    %1175 = vmatprep.subr.bf16.mxu0 0
    %1176 = vmatpush2.bf16.msra.mxu0 %v1099
    %1177 = vmatprep.mubr.bf16.mxu0 %v1138
    %1178 = vmatmul.mubr.bf16.gmra.mxu0 %v1137
    %v1179 = vpop.f32.mrf.mxu0
    %v1180 = vadd.f32 %v1129, %v1179
    %v1181 = vpop.f32.mrf.mxu0
    %v1182 = vpop.f32.mrf.mxu0
    %v1183 = vpop.f32.mrf.mxu0
    %1184 = vdwg.mxu0
    %1185 = vmatprep.subr.bf16.mxu0 0
    %1186 = vmatpush1.bf16.msra.mxu0 %v1114
    %1187 = vmatprep.subr.bf16.mxu0 0
    %1188 = vmatpush1.bf16.msra.mxu0 %v1113
    %1189 = vmatprep.subr.bf16.mxu0 0
    %1190 = vmatpush1.bf16.msra.mxu0 %v1112
    %1191 = vmatprep.subr.bf16.mxu0 0
    %1192 = vmatpush1.bf16.msra.mxu0 %v1111
    %1193 = vmatprep.subr.bf16.mxu0 0
    %1194 = vmatpush1.bf16.msra.mxu0 %v1110
    %1195 = vmatprep.subr.bf16.mxu0 0
    %1196 = vmatpush1.bf16.msra.mxu0 %v1109
    %1197 = vmatprep.subr.bf16.mxu0 0
    %1198 = vmatpush1.bf16.msra.mxu0 %v1108
    %1199 = vmatprep.subr.bf16.mxu0 0
    %1200 = vmatpush1.bf16.msra.mxu0 %v1107
    %1201 = vmatprep.subr.bf16.mxu0 0
    %1202 = vmatpush2.bf16.msra.mxu0 %v1122
    %1203 = vmatprep.subr.bf16.mxu0 0
    %1204 = vmatpush2.bf16.msra.mxu0 %v1121
    %1205 = vmatprep.subr.bf16.mxu0 0
    %1206 = vmatpush2.bf16.msra.mxu0 %v1120
    %1207 = vmatprep.subr.bf16.mxu0 0
    %1208 = vmatpush2.bf16.msra.mxu0 %v1119
    %1209 = vmatprep.subr.bf16.mxu0 0
    %1210 = vmatpush2.bf16.msra.mxu0 %v1118
    %1211 = vmatprep.subr.bf16.mxu0 0
    %1212 = vmatpush2.bf16.msra.mxu0 %v1117
    %1213 = vmatprep.subr.bf16.mxu0 0
    %1214 = vmatpush2.bf16.msra.mxu0 %v1116
    %1215 = vmatprep.subr.bf16.mxu0 0
    %1216 = vmatpush2.bf16.msra.mxu0 %v1115
    %1217 = vmatprep.mubr.bf16.mxu0 %v1140
    %1218 = vmatmul.mubr.bf16.gmra.mxu0 %v1139
    %v1219 = vpop.f32.mrf.mxu0
    %v1220 = vadd.f32 %v1180, %v1219
    %v1221 = vpop.f32.mrf.mxu0
    %v1222 = vpop.f32.mrf.mxu0
    %v1223 = vpop.f32.mrf.mxu0
    %1224 = vdwg.mxu0
    %vm1225 = vcmask 64512
    %1226 = vst.msk [vmem:[#allocation2] sm:$0xff] %vm1225, %v1220
    // Predicated region
    $region22: #{tpu_custom_call.1} parent=1 // pred_check
      _
    $region23: #{tpu_custom_call.1} parent=1 // pred_check_branch
      %1228 = sbr.rel (0) target = $region25
    $region24: #{tpu_custom_call.1} parent=1 // pred_region
      %s1230 = ssub.s32 128, 128
      %1231 = vsyncadd [#allocation3], %s1230
      %s1233 = sshll.u32 [#allocation2], 4
      %s1234 = int_to_ptr.vmem [resolvable:$true] %s1233
      %1236 = dma.vmem_to_hbm [thread:$0]  %s1234, 128, %s5, [#allocation3]
    $region25: #{tpu_custom_call.1} parent=1 // pred_fallthru
      _
    // Predicated region
    $region26: #{tpu_custom_call.1} parent=1 // pred_check
      _
    $region27: #{tpu_custom_call.1} parent=1 // pred_check_branch
      %1238 = sbr.rel (0) target = $region29
    $region28: #{tpu_custom_call.1} parent=1 // pred_region
      %1239 = dma.done [#allocation3], 128
    $region29: #{tpu_custom_call.1} parent=1 // pred_fallthru
      _
    %1240 = vsyncpa [#allocation3], 1

</llo_original>
